<compile_context>
chip_gen: v6e
topology: v6e:2x2x1
jax: 0.10.0
libtpu: 0.0.40
codegen_flags: <defaults>
</compile_context>

<pallas_src>
import functools

import jax
import jax.numpy as jnp
from jax.experimental import pallas as pl
from jax.experimental.pallas import tpu as pltpu


def _focal_loss_kernel(logit_ref, tgt_ref, alpha_ref, out_ref, acc_ref, *,
                       num_class, gamma, smooth, inv_denom, hw, tile_hw,
                       use_alpha):
    n = pl.program_id(0)
    j = pl.program_id(1)

    @pl.when(jnp.logical_and(n == 0, j == 0))
    def _():
        acc_ref[...] = jnp.zeros_like(acc_ref)

    logit = logit_ref[0].astype(jnp.float32)          # (C, t), lane-dense
    tgt = tgt_ref[0]                                  # (1, t), int32
    tgt = jnp.where(tgt == 225, 0, tgt)               # idx[idx == 225] = 0

    # one-hot via class-iota compare (scatter_ equivalent); classes on sublanes
    cls = jax.lax.broadcasted_iota(jnp.int32, logit.shape, 0)   # (C, t)
    hit = cls == tgt                                            # (C, t) bool

    if smooth:
        lo = smooth / (num_class - 1)
        hi = 1.0 - smooth
        one_hot = jnp.where(hit, hi, lo)              # clamp == 2-value select
    else:
        one_hot = hit.astype(jnp.float32)

    pt = jnp.sum(one_hot * logit, axis=0, keepdims=True) + smooth   # (1, t)
    logpt = jnp.log(pt)

    # (1 - pt) ** gamma with gamma a static Python float: avoid generic power
    # (exp+log on the single-slot EUP) for the common cases.
    if gamma == 0.0:
        loss = logpt
    elif gamma == 1.0:
        loss = (1.0 - pt) * logpt
    elif gamma == 2.0:
        omp = 1.0 - pt
        loss = omp * omp * logpt
    else:
        # clamp the base at 0 so a fractional gamma never produces NaN
        loss = jnp.power(jnp.maximum(1.0 - pt, 0.0), gamma) * logpt

    if use_alpha:
        a = alpha_ref[...][:, 0:1]                    # (C, 1)
        alpha_w = jnp.sum(jnp.where(hit, a, 0.0), axis=0, keepdims=True)
        loss = alpha_w * loss
    loss = -loss                                      # (1, t)

    # mask the ragged last spatial tile (block may over-read past HW);
    # keep the mask AFTER the log so garbage lanes are selected away, not used.
    pos = j * tile_hw + jax.lax.broadcasted_iota(jnp.int32, loss.shape, 1)
    loss = jnp.where(pos < hw, loss, 0.0)

    # per-lane partial sums: pure elementwise VPU add each step
    acc_ref[...] = acc_ref[...] + loss

    @pl.when(jnp.logical_and(n == pl.num_programs(0) - 1,
                             j == pl.num_programs(1) - 1))
    def _():
        out_ref[...] = jnp.sum(acc_ref[...], axis=1, keepdims=True) * inv_denom


def _pick_tile_hw(hw, num_class, itemsize):
    """~1-2 MB of logits per grid step, lane-aligned, capped for VMEM safety."""
    target_bytes = 2 << 20
    t = (target_bytes // max(1, num_class * itemsize)) // 128 * 128
    t = max(128, min(t, 64 * 1024))
    return hw if t >= hw else t


def focal_loss(logit, target, *, apply_nonlin=None, alpha=None, gamma=1.0,
               balance_index=0, smooth=1e-5, size_average=True, tile_hw=None):
    if smooth is not None and (smooth < 0 or smooth > 1.0):
        raise ValueError("smooth value should be in [0,1]")
    if apply_nonlin is not None:
        logit = apply_nonlin(logit)

    num_class = logit.shape[1]

    # --- glue: natural NCHW -> (N, C, HW), no transpose / no HBM copy -------
    if logit.ndim > 2:
        n_batch = logit.shape[0]
        logit3d = logit.reshape(n_batch, num_class, -1)
    else:
        # 2-D (M, C) input: put rows on the lane axis (one small transpose)
        logit3d = jnp.swapaxes(logit, 0, 1)[None]     # (1, C, M)
    n_eff, _, hw = logit3d.shape
    tgt3d = target.reshape(n_eff, 1, hw).astype(jnp.int32)
    m_total = n_eff * hw

    # --- alpha setup (mirrors the torch module) ------------------------------
    use_alpha = alpha is not None
    if alpha is None:
        alpha_vec = jnp.ones((num_class,), jnp.float32)
    elif isinstance(alpha, float):
        alpha_vec = jnp.full((num_class,), 1.0 - alpha, jnp.float32)
        alpha_vec = alpha_vec.at[balance_index].set(alpha)
    elif isinstance(alpha, (list, tuple)) or hasattr(alpha, "shape"):
        a = jnp.asarray(alpha, jnp.float32).reshape(-1)
        if a.shape[0] != num_class:
            raise ValueError("alpha length must equal num_class")
        a = a / a.sum()
        alpha_vec = 1.0 / a
    else:
        raise TypeError("Not support alpha type")
    alpha2d = jnp.broadcast_to(alpha_vec.reshape(num_class, 1),
                               (num_class, 128)).astype(jnp.float32)

    if tile_hw is None:
        tile_hw = _pick_tile_hw(hw, num_class,
                                jnp.dtype(logit3d.dtype).itemsize)
    num_j = pl.cdiv(hw, tile_hw)

    kernel = functools.partial(
        _focal_loss_kernel,
        num_class=num_class,
        gamma=float(gamma),
        smooth=float(smooth) if smooth is not None else 0.0,
        inv_denom=(1.0 / m_total) if size_average else 1.0,
        hw=hw,
        tile_hw=tile_hw,
        use_alpha=use_alpha,
    )

    out = pl.pallas_call(
        kernel,
        out_shape=jax.ShapeDtypeStruct((1, 1), jnp.float32),
        grid_spec=pltpu.PrefetchScalarGridSpec(
            num_scalar_prefetch=0,
            grid=(n_eff, num_j),
            in_specs=[
                pl.BlockSpec((1, num_class, tile_hw), lambda n, j: (n, 0, j)),
                pl.BlockSpec((1, 1, tile_hw), lambda n, j: (n, 0, j)),
                pl.BlockSpec((num_class, 128), lambda n, j: (0, 0)),
            ],
            out_specs=pl.BlockSpec((1, 1), lambda n, j: (0, 0)),
            scratch_shapes=[pltpu.VMEM((1, tile_hw), jnp.float32)],
        ),
        compiler_params=pltpu.CompilerParams(
            dimension_semantics=("arbitrary", "arbitrary")),
    )(logit3d, tgt3d, alpha2d)
    return out[0, 0]


def _focal_loss_ref(logit, target, alpha_vec=None, gamma=1.0, smooth=1e-5,
                    size_average=True):
    """Pure-JAX reference mirroring the torch module."""
    n, c = logit.shape[0], logit.shape[1]
    l2 = jnp.transpose(logit.reshape(n, c, -1), (0, 2, 1)).reshape(-1, c)
    t = target.reshape(-1)
    t = jnp.where(t == 225, 0, t)
    oh = jax.nn.one_hot(t, c, dtype=jnp.float32)
    if smooth:
        oh = jnp.clip(oh, smooth / (c - 1), 1.0 - smooth)
    pt = jnp.sum(oh * l2.astype(jnp.float32), axis=1) + smooth
    logpt = jnp.log(pt)
    if alpha_vec is None:
        alpha_vec = jnp.ones((c,), jnp.float32)
    a = alpha_vec[t]
    loss = -a * jnp.power(1.0 - pt, gamma) * logpt
    return jnp.mean(loss) if size_average else jnp.sum(loss)


if __name__ == "__main__":
    key = jax.random.PRNGKey(0)
    N, C, H, W = 2, 4, 16, 16
    k1, k2 = jax.random.split(key)

    # apply_nonlin=None in the module; feed probabilities (softmax of random
    # logits) so log(pt) is well defined, as the module expects in practice.
    raw = jax.random.normal(k1, (N, C, H, W), jnp.float32)
    probs = jax.nn.softmax(raw, axis=1)
    target = jax.random.randint(k2, (N, 1, H, W), 0, C, dtype=jnp.int32)

    # case 1: defaults (alpha=None, gamma=1, mean)
    loss1 = jax.block_until_ready(focal_loss(probs, target))
    ref1 = _focal_loss_ref(probs, target)
    assert jnp.allclose(loss1, ref1, rtol=1e-5, atol=1e-6), (loss1, ref1)

    # case 2: list alpha, gamma=2, sum reduction (exercises alpha/gamma paths)
    alpha_list = [0.1, 0.2, 0.3, 0.4]
    loss2 = jax.block_until_ready(
        focal_loss(probs, target, alpha=alpha_list, gamma=2.0,
                   size_average=False))
    a = jnp.asarray(alpha_list, jnp.float32)
    a = a / a.sum()
    ref2 = _focal_loss_ref(probs, target, alpha_vec=1.0 / a, gamma=2.0,
                           size_average=False)
    assert jnp.allclose(loss2, ref2, rtol=1e-4, atol=1e-4), (loss2, ref2)

    print("KERNEL_OK")
</pallas_src>

<mosaic_0001>
module attributes {stable_mosaic.version = 11 : i64} {
  func.func @_focal_loss_kernel(%arg0: i32, %arg1: i32, %arg2: memref<1x4x256xf32, #tpu.memory_space<vmem>>, %arg3: memref<1x1x256xi32, #tpu.memory_space<vmem>>, %arg4: memref<4x128xf32, #tpu.memory_space<vmem>>, %arg5: memref<1x1xf32, #tpu.memory_space<vmem>>, %arg6: memref<1x256xf32, #tpu.memory_space<vmem>>) attributes {dimension_semantics = [#tpu.dimension_semantics<arbitrary>, #tpu.dimension_semantics<arbitrary>], iteration_bounds = array<i64: 2, 1>, scalar_prefetch = 0 : i64, scratch_operands = 1 : i64, tpu.core_type = #tpu.core_type<tc>, window_params = [{transform_indices = @transform_0, window_bounds = array<i64: 1, 4, 256>}, {transform_indices = @transform_1, window_bounds = array<i64: 1, 1, 256>}, {pipeline_mode = #tpu.pipeline_mode<synchronous>, transform_indices = @transform_2, window_bounds = array<i64: 4, 128>}, {pipeline_mode = #tpu.pipeline_mode<synchronous>, transform_indices = @transform_3, window_bounds = array<i64: 1, 1>}]} {
    %c0_i32 = arith.constant 0 : i32
    %0 = arith.cmpi eq, %arg0, %c0_i32 : i32
    %c0_i32_0 = arith.constant 0 : i32
    %1 = arith.cmpi eq, %arg1, %c0_i32_0 : i32
    %2 = arith.andi %0, %1 : i1
    %3 = arith.extui %2 : i1 to i32
    %c0_i32_1 = arith.constant 0 : i32
    %4 = arith.cmpi ne, %3, %c0_i32_1 : i32
    scf.if %4 {
      %cst_21 = arith.constant 0.000000e+00 : f32
      %46 = vector.broadcast %cst_21 : f32 to vector<1x256xf32>
      %c0_22 = arith.constant 0 : index
      %c0_23 = arith.constant 0 : index
      %47 = vector.load %arg6[%c0_22, %c0_23] : memref<1x256xf32, #tpu.memory_space<vmem>>, vector<1x256xf32>
      tpu.vector_store %arg6[%c0_22, %c0_23], %46 {strides = array<i32>} : memref<1x256xf32, #tpu.memory_space<vmem>>, vector<1x256xf32>,
    } else {
    }
    %c0 = arith.constant 0 : index
    %c0_2 = arith.constant 0 : index
    %c0_3 = arith.constant 0 : index
    %5 = vector.load %arg2[%c0, %c0_2, %c0_3] : memref<1x4x256xf32, #tpu.memory_space<vmem>>, vector<1x4x256xf32>
    %6 = vector.shape_cast %5 : vector<1x4x256xf32> to vector<4x256xf32>
    %c0_4 = arith.constant 0 : index
    %c0_5 = arith.constant 0 : index
    %c0_6 = arith.constant 0 : index
    %7 = vector.load %arg3[%c0_4, %c0_5, %c0_6] : memref<1x1x256xi32, #tpu.memory_space<vmem>>, vector<1x1x256xi32>
    %8 = vector.shape_cast %7 : vector<1x1x256xi32> to vector<1x256xi32>
    %c225_i32 = arith.constant 225 : i32
    %9 = vector.broadcast %c225_i32 : i32 to vector<1x256xi32>
    %10 = arith.cmpi eq, %8, %9 : vector<1x256xi32>
    %c0_i32_7 = arith.constant 0 : i32
    %11 = vector.broadcast %c0_i32_7 : i32 to vector<1x256xi32>
    %12 = arith.select %10, %11, %8 : vector<1x256xi1>, vector<1x256xi32>
    %13 = tpu.iota {dimensions = array<i32: 0>} : vector<4x256xi32>
    %14 = vector.broadcast %12 : vector<1x256xi32> to vector<4x256xi32>
    %15 = arith.cmpi eq, %13, %14 : vector<4x256xi32>
    %cst = arith.constant 0.999989986 : f32
    %cst_8 = arith.constant 3.33333332E-6 : f32
    %16 = vector.broadcast %cst : f32 to vector<4x256xf32>
    %17 = vector.broadcast %cst_8 : f32 to vector<4x256xf32>
    %18 = arith.select %15, %16, %17 : vector<4x256xi1>, vector<4x256xf32>
    %19 = arith.mulf %18, %6 : vector<4x256xf32>
    %cst_9 = arith.constant dense<0.000000e+00> : vector<256xf32>
    %20 = vector.multi_reduction <add>, %19, %cst_9 [0] : vector<4x256xf32> to vector<256xf32>
    %21 = vector.shape_cast %20 : vector<256xf32> to vector<1x256xf32>
    %cst_10 = arith.constant 9.99999974E-6 : f32
    %22 = vector.broadcast %cst_10 : f32 to vector<1x256xf32>
    %23 = arith.addf %21, %22 : vector<1x256xf32>
    %24 = math.log %23 : vector<1x256xf32>
    %cst_11 = arith.constant 1.000000e+00 : f32
    %25 = vector.broadcast %cst_11 : f32 to vector<1x256xf32>
    %26 = arith.subf %25, %23 : vector<1x256xf32>
    %27 = arith.mulf %26, %24 : vector<1x256xf32>
    %cst_12 = arith.constant 0.000000e+00 : f32
    %28 = vector.broadcast %cst_12 : f32 to vector<1x256xf32>
    %29 = arith.subf %28, %27 : vector<1x256xf32>
    %c256_i32 = arith.constant 256 : i32
    %30 = arith.muli %arg1, %c256_i32 : i32
    %31 = tpu.iota {dimensions = array<i32: 1>} : vector<1x256xi32>
    %32 = vector.broadcast %30 : i32 to vector<1x256xi32>
    %33 = arith.addi %32, %31 : vector<1x256xi32>
    %c256_i32_13 = arith.constant 256 : i32
    %34 = vector.broadcast %c256_i32_13 : i32 to vector<1x256xi32>
    %35 = arith.cmpi slt, %33, %34 : vector<1x256xi32>
    %cst_14 = arith.constant 0.000000e+00 : f32
    %36 = vector.broadcast %cst_14 : f32 to vector<1x256xf32>
    %37 = arith.select %35, %29, %36 : vector<1x256xi1>, vector<1x256xf32>
    %c0_15 = arith.constant 0 : index
    %c0_16 = arith.constant 0 : index
    %38 = vector.load %arg6[%c0_15, %c0_16] : memref<1x256xf32, #tpu.memory_space<vmem>>, vector<1x256xf32>
    %39 = arith.addf %38, %37 : vector<1x256xf32>
    %c0_17 = arith.constant 0 : index
    %c0_18 = arith.constant 0 : index
    %40 = vector.load %arg6[%c0_17, %c0_18] : memref<1x256xf32, #tpu.memory_space<vmem>>, vector<1x256xf32>
    tpu.vector_store %arg6[%c0_17, %c0_18], %39 {strides = array<i32>} : memref<1x256xf32, #tpu.memory_space<vmem>>, vector<1x256xf32>,
    %c1_i32 = arith.constant 1 : i32
    %41 = arith.cmpi eq, %arg0, %c1_i32 : i32
    %c0_i32_19 = arith.constant 0 : i32
    %42 = arith.cmpi eq, %arg1, %c0_i32_19 : i32
    %43 = arith.andi %41, %42 : i1
    %44 = arith.extui %43 : i1 to i32
    %c0_i32_20 = arith.constant 0 : i32
    %45 = arith.cmpi ne, %44, %c0_i32_20 : i32
    scf.if %45 {
      %c0_21 = arith.constant 0 : index
      %c0_22 = arith.constant 0 : index
      %46 = vector.load %arg6[%c0_21, %c0_22] : memref<1x256xf32, #tpu.memory_space<vmem>>, vector<1x256xf32>
      %cst_23 = arith.constant dense<0.000000e+00> : vector<1xf32>
      %47 = vector.multi_reduction <add>, %46, %cst_23 [1] : vector<1x256xf32> to vector<1xf32>
      %48 = vector.shape_cast %47 : vector<1xf32> to vector<1x1xf32>
      %cst_24 = arith.constant 0.001953125 : f32
      %49 = vector.broadcast %cst_24 : f32 to vector<1x1xf32>
      %50 = arith.mulf %48, %49 : vector<1x1xf32>
      %c0_25 = arith.constant 0 : index
      %c0_26 = arith.constant 0 : index
      %51 = vector.load %arg5[%c0_25, %c0_26] : memref<1x1xf32, #tpu.memory_space<vmem>>, vector<1x1xf32>
      tpu.vector_store %arg5[%c0_25, %c0_26], %50 {strides = array<i32>} : memref<1x1xf32, #tpu.memory_space<vmem>>, vector<1x1xf32>,
    } else {
    }
    return
  }
  func.func @transform_0(%arg0: i32, %arg1: i32) -> (i32, i32, i32) {
    %c0_i32 = arith.constant 0 : i32
    %c0_i32_0 = arith.constant 0 : i32
    return %arg0, %c0_i32, %arg1 : i32, i32, i32
  }
  func.func @transform_1(%arg0: i32, %arg1: i32) -> (i32, i32, i32) {
    %c0_i32 = arith.constant 0 : i32
    %c0_i32_0 = arith.constant 0 : i32
    return %arg0, %c0_i32, %arg1 : i32, i32, i32
  }
  func.func @transform_2(%arg0: i32, %arg1: i32) -> (i32, i32) {
    %c0_i32 = arith.constant 0 : i32
    %c0_i32_0 = arith.constant 0 : i32
    %c0_i32_1 = arith.constant 0 : i32
    return %c0_i32, %c0_i32_0 : i32, i32
  }
  func.func @transform_3(%arg0: i32, %arg1: i32) -> (i32, i32) {
    %c0_i32 = arith.constant 0 : i32
    %c0_i32_0 = arith.constant 0 : i32
    %c0_i32_1 = arith.constant 0 : i32
    return %c0_i32, %c0_i32_0 : i32, i32
  }
}

</mosaic_0001>

<llo_original>
// kernel: tpu_custom_call.1
$region0: #{tpu_custom_call.1}
  #allocation0 [shape = 'u32[]', space=smem, size = 0x4, offset = 0x4, fixed_abs, tag = 'smem constant byte address 0x4 - core index']
  #allocation1 [shape = 'u32[144,128]{1,0:T(1,128)}', space=vmem, size = 0x12000, scoped, tag = 'internal scratch']
  #allocation2 [shape = 'f32[1,256]{1,0:T(1,128)}', space=vmem, size = 0x400, scoped, tag = 'scratch operand']
  %s0 = inlined_call_operand.hbm [shape: f32[2,4,256], index: 0, kind: input, shape index: {}]
  %s1 = inlined_call_operand.hbm [shape: s32[2,1,256], index: 1, kind: input, shape index: {}]
  %s2 = inlined_call_operand.hbm [shape: f32[4,128], index: 2, kind: input, shape index: {}]
  %s3 = inlined_call_operand.hbm [shape: f32[1,1], index: 3, kind: output, shape index: {}]
  %s4 = sld [smem:[#allocation0]]
  $region65: #{tpu_custom_call.1} parent=0
    _
  %s6 = ssub.s32 1, %s4
  %s7 = scalar_select 0, %s6, %s4
  $region1: #{tpu_custom_call.1} parent=0
    #allocation3 [shape = 'u8[8192]{0}', space=vmem, size = 0x2000, scoped, tag = 'input window, operand 0']
    #allocation4 [shape = 's32[2]{0}', space=sflag, size = 0x8, scoped, tag = 'scoped memory for tpu_custom_call.1']
    #allocation5 [shape = 's32[2]{0}', space=sflag, size = 0x8, scoped, tag = 'scoped memory for tpu_custom_call.1']
    #allocation6 [shape = 'u8[2048]{0}', space=vmem, size = 0x800, scoped, tag = 'input window, operand 1']
    #allocation7 [shape = 's32[2]{0}', space=sflag, size = 0x8, scoped, tag = 'scoped memory for tpu_custom_call.1']
    #allocation8 [shape = 'u8[2048]{0}', space=vmem, size = 0x800, scoped, tag = 'input window, operand 2, single buffered']
    #allocation9 [shape = 'u8[512]{0}', space=vmem, size = 0x400, scoped, tag = 'output window, operand 0, single buffered']
    %8 = vsyncpa [#allocation4], 0
    %s9 = scalar_lea.sflag [#allocation4], 1
    %10 = vsyncpa %s9, 0
    %11 = vsyncpa [#allocation7], 0
    %s12 = scalar_lea.sflag [#allocation7], 1
    %13 = vsyncpa %s12, 0
    %14 = vsyncpa [#allocation5], 0
    loop: start=0, step=1, limit=4
    $region2: #{tpu_custom_call.1} parent=1 // loop_pre_header
      _
    $region3: #{tpu_custom_call.1} parent=1 // loop_header
      %s16 = sphi 0, %s20
      %p17 = scmp.ge.s32.totalorder %s16, 4
      %s23 = sphi 0, %s35
      %s24 = sphi 0, %s31
      %s25 = sphi 0, %s23
      %s26 = sphi 0, %s24
      %s27 = sphi 0, %s25
      %s28 = sphi 0, %s26
      %s40 = sphi 0, %s42
      %s43 = sphi 0, %s40
      %s44 = sphi 0, %s43
      %s60 = sphi 0, %s44
      %s68 = sphi 0, %s70
      %s71 = sphi 0, %s68
      %s72 = sphi 0, %s71
      %s88 = sphi 0, %s72
      %s92 = sphi 0, %s92
      %s94 = sphi 0, %s92
      %s95 = sphi 0, %s94
      %s109 = sphi 0, %s95
      %s113 = sphi 0, %s113
      %s115 = sphi 0, %s113
      %s116 = sphi 0, %s115
      %s130 = sphi 0, %s116
    $region4: #{tpu_custom_call.1} parent=1 // loop_header_branch
      %19 = sbr.rel (%p17) target = $region8
    $region5: #{tpu_custom_call.1} parent=1 // loop_body
      %s21 = ssub.s32 %s16, 1
      %s22 = ssub.s32 %s16, 2
      %s29 = sadd.s32 1, %s24
      %p30 = scmp.ge.s32.totalorder %s29, 1
      %s31 = scalar_select %p30, 0, %s29
      %s32 = sadd.s32 1, %s23
      %s33 = scalar_select %p30, %s32, %s23
      %p34 = scmp.ge.s32.totalorder %s33, 2
      %s35 = scalar_select %p34, 0, %s33
      %s36 = ssub.s32 %s23, %s35
      %s37 = ssub.s32 %s24, %s31
      %s38 = sor.u32 %s36, %s37
      %p39 = scmp.eq.s32.totalorder %s38, 0
      %s41 = sadd.s32 %s40, 1
      %s42 = scalar_select %p39, %s40, %s41
      %p45 = pneg %p39
      %p46 = scmp.eq.s32.totalorder %s16, 1
      %p47 = por %p45, %p46
      %p48 = scmp.ne.s32.totalorder %s40, %s43
      %p49 = scmp.eq.s32.totalorder %s16, 0
      %p50 = por %p48, %p49
      %p51 = scmp.ne.s32.totalorder %s40, %s43
      %p52 = scmp.eq.s32.totalorder %s21, 1
      %p53 = por %p51, %p52
      %p54 = scmp.ne.s32.totalorder %s43, %s44
      %p55 = scmp.eq.s32.totalorder %s21, 0
      %p56 = por %p54, %p55
      %p57 = scmp.ne.s32.totalorder %s43, %s44
      %p58 = scmp.eq.s32.totalorder %s22, 1
      %p59 = por %p57, %p58
      %p61 = scmp.ne.s32.totalorder %s44, %s60
      %p62 = scmp.eq.s32.totalorder %s22, 0
      %p63 = por %p61, %p62
      %s64 = ssub.s32 %s23, %s35
      %s65 = ssub.s32 %s24, %s31
      %s66 = sor.u32 %s64, %s65
      %p67 = scmp.eq.s32.totalorder %s66, 0
      %s69 = sadd.s32 %s68, 1
      %s70 = scalar_select %p67, %s68, %s69
      %p73 = pneg %p67
      %p74 = scmp.eq.s32.totalorder %s16, 1
      %p75 = por %p73, %p74
      %p76 = scmp.ne.s32.totalorder %s68, %s71
      %p77 = scmp.eq.s32.totalorder %s16, 0
      %p78 = por %p76, %p77
      %p79 = scmp.ne.s32.totalorder %s68, %s71
      %p80 = scmp.eq.s32.totalorder %s21, 1
      %p81 = por %p79, %p80
      %p82 = scmp.ne.s32.totalorder %s71, %s72
      %p83 = scmp.eq.s32.totalorder %s21, 0
      %p84 = por %p82, %p83
      %p85 = scmp.ne.s32.totalorder %s71, %s72
      %p86 = scmp.eq.s32.totalorder %s22, 1
      %p87 = por %p85, %p86
      %p89 = scmp.ne.s32.totalorder %s72, %s88
      %p90 = scmp.eq.s32.totalorder %s22, 0
      %p91 = por %p89, %p90
      %s93 = sadd.s32 %s92, 1
      %p96 = scmp.eq.s32.totalorder %s16, 1
      %p97 = scmp.ne.s32.totalorder %s92, %s94
      %p98 = scmp.eq.s32.totalorder %s16, 0
      %p99 = por %p97, %p98
      %p100 = scmp.ne.s32.totalorder %s92, %s94
      %p101 = scmp.eq.s32.totalorder %s21, 1
      %p102 = por %p100, %p101
      %p103 = scmp.ne.s32.totalorder %s94, %s95
      %p104 = scmp.eq.s32.totalorder %s21, 0
      %p105 = por %p103, %p104
      %p106 = scmp.ne.s32.totalorder %s94, %s95
      %p107 = scmp.eq.s32.totalorder %s22, 1
      %p108 = por %p106, %p107
      %p110 = scmp.ne.s32.totalorder %s95, %s109
      %p111 = scmp.eq.s32.totalorder %s22, 0
      %p112 = por %p110, %p111
      %s114 = sadd.s32 %s113, 1
      %p117 = scmp.eq.s32.totalorder %s16, 1
      %p118 = scmp.ne.s32.totalorder %s113, %s115
      %p119 = scmp.eq.s32.totalorder %s16, 0
      %p120 = por %p118, %p119
      %p121 = scmp.ne.s32.totalorder %s113, %s115
      %p122 = scmp.eq.s32.totalorder %s21, 1
      %p123 = por %p121, %p122
      %p124 = scmp.ne.s32.totalorder %s115, %s116
      %p125 = scmp.eq.s32.totalorder %s21, 0
      %p126 = por %p124, %p125
      %p127 = scmp.ne.s32.totalorder %s115, %s116
      %p128 = scmp.eq.s32.totalorder %s22, 1
      %p129 = por %p127, %p128
      %p131 = scmp.ne.s32.totalorder %s116, %s130
      %p132 = scmp.eq.s32.totalorder %s22, 0
      %p133 = por %p131, %p132
      %p134 = scmp.le.s32.totalorder 1, %s16
      %p135 = scmp.lt.s32.totalorder %s16, 3
      %p136 = pnand %p134, %p135
      %p137 = pneg %p136
      // Predicated region
      $region9: #{tpu_custom_call.1} parent=5 // pred_check
        _
      $region10: #{tpu_custom_call.1} parent=5 // pred_check_branch
        %139 = sbr.rel (%p136) target = $region12
      $region11: #{tpu_custom_call.1} parent=5 // pred_region
        %s140 = ssub.s32 %s16, 1
        // Predicated region
        $region13: #{tpu_custom_call.1} parent=11 // pred_check
          %p141 = pneg %p105
        $region14: #{tpu_custom_call.1} parent=11 // pred_check_branch
          %143 = sbr.rel (%p141) target = $region16
        $region15: #{tpu_custom_call.1} parent=11 // pred_region
          %s145 = ssub.s32 64, 64
          %146 = vsyncadd [#allocation7], %s145
          %s148 = sshll.u32 [#allocation8], 4
          %s149 = int_to_ptr.vmem [resolvable:$true] %s148
          %151 = dma.hbm_to_vmem [thread:$0]  %s2, 64, %s149, [#allocation7]
        $region16: #{tpu_custom_call.1} parent=11 // pred_fallthru
          _
      $region12: #{tpu_custom_call.1} parent=5 // pred_fallthru
        _
      %p152 = scmp.lt.s32.totalorder %s16, 2
      // Predicated region
      $region17: #{tpu_custom_call.1} parent=5 // pred_check
        %p153 = pneg %p152
      $region18: #{tpu_custom_call.1} parent=5 // pred_check_branch
        %155 = sbr.rel (%p153) target = $region20
      $region19: #{tpu_custom_call.1} parent=5 // pred_region
        // Predicated region
        $region21: #{tpu_custom_call.1} parent=19 // pred_check
          %p156 = pneg %p50
        $region22: #{tpu_custom_call.1} parent=19 // pred_check_branch
          %158 = sbr.rel (%p156) target = $region24
        $region23: #{tpu_custom_call.1} parent=19 // pred_region
          %s159 = sand.u32 %s40, 1
          %s160 = scalar_lea.sflag [#allocation4], %s159
          %s161 = sand.u32 %s40, 1
          %s162 = smul.addr %s161, 8
          %s163 = scalar_lea.vmem [#allocation3], %s162
          %s164 = smul.u32 2, %s24
          %s166 = ssub.s32 128, 128
          %167 = vsyncadd %s160, %s166
          %s168 = smul.addr %s23, 2
          %s169 = sadd.s32 %s164, %s168
          %s170 = smul.addr %s169, 64
          %s171 = scalar_lea.hbm %s0, %s170
          %s173 = sshll.u32 %s163, 4
          %s174 = int_to_ptr.vmem [resolvable:$true] %s173
          %176 = dma.hbm_to_vmem [thread:$0]  %s171, 128, %s174, %s160
        $region24: #{tpu_custom_call.1} parent=19 // pred_fallthru
          _
        // Predicated region
        $region25: #{tpu_custom_call.1} parent=19 // pred_check
          %p177 = pneg %p78
        $region26: #{tpu_custom_call.1} parent=19 // pred_check_branch
          %179 = sbr.rel (%p177) target = $region28
        $region27: #{tpu_custom_call.1} parent=19 // pred_region
          %s180 = sand.u32 %s16, 1
          %s181 = scalar_lea.sflag [#allocation7], %s180
          %s182 = sand.u32 %s68, 1
          %s183 = smul.addr %s182, 2
          %s184 = scalar_lea.vmem [#allocation6], %s183
          %s185 = smul.u32 2, %s24
          %s187 = ssub.s32 32, 32
          %188 = vsyncadd %s181, %s187
          %s189 = smul.addr %s23, 2
          %s190 = sadd.s32 %s185, %s189
          %s191 = smul.addr %s190, 16
          %s192 = scalar_lea.hbm %s1, %s191
          %s194 = sshll.u32 %s184, 4
          %s195 = int_to_ptr.vmem [resolvable:$true] %s194
          %197 = dma.hbm_to_vmem [thread:$0]  %s192, 32, %s195, %s181
        $region28: #{tpu_custom_call.1} parent=19 // pred_fallthru
          _
      $region20: #{tpu_custom_call.1} parent=5 // pred_fallthru
        _
      %p198 = scmp.le.s32.totalorder 1, %s16
      %p199 = scmp.lt.s32.totalorder %s16, 3
      %p200 = pnand %p198, %p199
      %p201 = pneg %p200
      // Predicated region
      $region29: #{tpu_custom_call.1} parent=5 // pred_check
        _
      $region30: #{tpu_custom_call.1} parent=5 // pred_check_branch
        %203 = sbr.rel (%p200) target = $region32
      $region31: #{tpu_custom_call.1} parent=5 // pred_region
        %s204 = ssub.s32 %s16, 1
        %s205 = sand.u32 %s43, 1
        %s206 = scalar_lea.sflag [#allocation4], %s205
        %s207 = sand.u32 %s43, 1
        %s208 = smul.addr %s207, 8
        %s209 = scalar_lea.vmem [#allocation3], %s208
        // Predicated region
        $region33: #{tpu_custom_call.1} parent=31 // pred_check
          %p210 = pneg %p56
        $region34: #{tpu_custom_call.1} parent=31 // pred_check_branch
          %212 = sbr.rel (%p210) target = $region36
        $region35: #{tpu_custom_call.1} parent=31 // pred_region
          %213 = dma.done %s206, 128
        $region36: #{tpu_custom_call.1} parent=31 // pred_fallthru
          _
        %s214 = sand.u32 %s21, 1
        %s215 = scalar_lea.sflag [#allocation7], %s214
        %s216 = sand.u32 %s71, 1
        %s217 = smul.addr %s216, 2
        %s218 = scalar_lea.vmem [#allocation6], %s217
        // Predicated region
        $region37: #{tpu_custom_call.1} parent=31 // pred_check
          %p219 = pneg %p84
        $region38: #{tpu_custom_call.1} parent=31 // pred_check_branch
          %221 = sbr.rel (%p219) target = $region40
        $region39: #{tpu_custom_call.1} parent=31 // pred_region
          %222 = dma.done %s215, 32
        $region40: #{tpu_custom_call.1} parent=31 // pred_fallthru
          _
        // Predicated region
        $region41: #{tpu_custom_call.1} parent=31 // pred_check
          %p223 = pneg %p105
        $region42: #{tpu_custom_call.1} parent=31 // pred_check_branch
          %225 = sbr.rel (%p223) target = $region44
        $region43: #{tpu_custom_call.1} parent=31 // pred_region
          %226 = dma.done [#allocation7], 64
        $region44: #{tpu_custom_call.1} parent=31 // pred_fallthru
          _
        %s227 = sand.u32 %s43, 1
        %s228 = scalar_lea.sflag [#allocation4], %s227
        %s229 = sand.u32 %s43, 1
        %s230 = smul.addr %s229, 8
        %s231 = scalar_lea.vmem [#allocation3], %s230
        %p232 = pneg %p56
        %p233 = pneg %p53
        %s234 = sand.u32 %s21, 1
        %s235 = scalar_lea.sflag [#allocation7], %s234
        %s236 = sand.u32 %s71, 1
        %s237 = smul.addr %s236, 2
        %s238 = scalar_lea.vmem [#allocation6], %s237
        %p239 = pneg %p84
        %p240 = pneg %p81
        %p241 = pneg %p105
        %p242 = pneg %p102
        %p243 = pneg %p126
        %p244 = pneg %p123
        %s245 = smul.u32 2, %s26
        %s246 = smul.u32 2, %s26
        %p247 = scmp.eq.s32.totalorder %s25, 0
        %p248 = scmp.eq.s32.totalorder %s26, 0
        %p249 = pnand %p247, %p248
        %p250 = pneg %p249
        // Predicated region
        $region45: #{tpu_custom_call.1} parent=31 // pred_check
          _
        $region46: #{tpu_custom_call.1} parent=31 // pred_check_branch
          %252 = sbr.rel (%p249) target = $region48
        $region47: #{tpu_custom_call.1} parent=31 // pred_region
          %v253 = vlaneseq
          %vm254 = vcmp.ge.s32.totalorder %v253, 0
          %vm255 = vcmp.lt.s32.totalorder %v253, 256
          %vm256 = vmand %vm254, %vm255
          %257 = vst.msk [vmem:[#allocation2] sm:$0x3] %vm256, 0.0
        $region48: #{tpu_custom_call.1} parent=31 // pred_fallthru
          _
        %v258 = vld [vmem:[%s209] sm:$0xff]
        %v259 = vld [vmem:[%s218] sm:$0x3]
        %vm260 = vcmp.eq.s32.totalorder %v259, 225
        %v261 = vsel %vm260, 0, %v259
        %v262 = vlaneseq
        %v263 = vshrl.u32 %v262, 7
        %v264 = vlaneseq
        %v265 = vshrl.u32 %v264, 7
        %v266 = vsub.s32 0, %v265
        %v267 = vrot.slane %v261, %v266
        %v268 = vlaneseq
        %v269 = vshrl.u32 %v268, 7
        %v270 = vsub.s32 1, %v269
        %v271 = vrot.slane %v261, %v270
        %vm272 = vcmp.eq.s32.totalorder %v263, %v267
        %vm273 = vcmp.eq.s32.totalorder %v263, %v271
        %v274 = vsel %vm272, 0.99999, 3.3333333e-06
        %v275 = vsel %vm273, 0.99999, 3.3333333e-06
        %v277 = vcombine.high %v258, %v258
        %v279 = vmul.f32 %v274, %v258
        %v280 = vmul.f32 %v275, %v277
        %vm281 = vcmask 1043456
        %v282 = vsel %vm281, %v279, 0.0
        %v283 = vrot.slane %v282, 4
        %v284 = vadd.f32 %v282, %v283
        %v285 = vrot.slane %v284, 2
        %v286 = vadd.f32 %v284, %v285
        %v287 = vrot.slane %v286, 1
        %v288 = vadd.f32 %v286, %v287
        %v289 = vsel %vm281, %v280, 0.0
        %v290 = vrot.slane %v289, 4
        %v291 = vadd.f32 %v289, %v290
        %v292 = vrot.slane %v291, 2
        %v293 = vadd.f32 %v291, %v292
        %v294 = vrot.slane %v293, 1
        %v295 = vadd.f32 %v293, %v294
        %v296 = vadd.f32 %v288, 1e-05
        %v297 = vadd.f32 %v295, 1e-05
        %v298 = vlog2.pop %v296
        %v299 = vmul.f32 %v298, 0.6931472
        %v300 = vlog2.pop %v297
        %v301 = vmul.f32 %v300, 0.6931472
        %v302 = vsub.f32 1.0, %v296
        %v303 = vsub.f32 1.0, %v297
        %v304 = vmul.f32 %v302, %v299
        %v305 = vmul.f32 %v303, %v301
        %v306 = vsub.f32 0.0, %v304
        %v307 = vsub.f32 0.0, %v305
        %s308 = smul.u32 %s26, 256
        %v309 = vlaneseq
        %v310 = vand.u32 %v309, 127
        %v311 = vadd.s32 %v310, 128
        %v312 = vstv %s308
        %v313 = vadd.s32 %v312, %v310
        %v314 = vadd.s32 %v312, %v311
        %vm315 = vcmp.lt.s32.totalorder %v313, 256
        %vm316 = vcmp.lt.s32.totalorder %v314, 256
        %v317 = vsel %vm315, %v306, 0.0
        %v318 = vsel %vm316, %v307, 0.0
        %v319 = vld [vmem:[#allocation2] sm:$0x3]
        %v322 = vcombine.low %v317, %v318
        %v324 = vunpack.c.l.s4 1966171168
        %v325 = vunpack.c.0.s8 %v324
        %v326 = vlaneseq
        %v327 = vshrl.u32 %v326, 7
        %v328 = vsub.s32 %v325, %v327
        %v329 = vrot.slane %v322, %v328
        %v331 = vunpack.c.l.s4 1966171168
        %v332 = vunpack.c.0.s8 %v331
        %v333 = vlaneseq
        %v334 = vshrl.u32 %v333, 7
        %v335 = vsub.s32 %v332, %v334
        %v336 = vrot.slane %v329, %v335
        %v338 = vadd.f32 %v319, %v336
        %v339 = vlaneseq
        %vm340 = vcmp.ge.s32.totalorder %v339, 0
        %vm341 = vcmp.lt.s32.totalorder %v339, 256
        %vm342 = vmand %vm340, %vm341
        %343 = vst.msk [vmem:[#allocation2] sm:$0x3] %vm342, %v338
        %p344 = scmp.eq.s32.totalorder %s25, 1
        %p345 = pnand %p344, %p248
        %p346 = pneg %p345
        // Predicated region
        $region49: #{tpu_custom_call.1} parent=31 // pred_check
          _
        $region50: #{tpu_custom_call.1} parent=31 // pred_check_branch
          %348 = sbr.rel (%p345) target = $region52
        $region51: #{tpu_custom_call.1} parent=31 // pred_region
          %v349 = vld [vmem:[#allocation2] sm:$0x3]
          %v351 = vlaneseq
          %v352 = vshrl.u32 %v351, 7
          %v353 = vsub.s32 0, %v352
          %v354 = vrot.slane %v349, %v353
          %v355 = vlaneseq
          %v356 = vshrl.u32 %v355, 7
          %v357 = vsub.s32 1, %v356
          %v358 = vrot.slane %v349, %v357
          %vm361 = vcmask 1040384
          %v362 = vsel %vm361, %v354, 0.0
          %v363 = vsel %vm361, %v358, 0.0
          %v364 = vadd.f32 %v362, %v363
          %365 = vadd.xlane.f32.xlu0 %v364
          %v366 = vpop.xlane.xlu0 %365
          %v367 = vmul.f32 %v366, 0.001953125
          %vm368 = vcmask 0
          %369 = vst.msk [vmem:[#allocation9] sm:$0x1] %vm368, %v367
        $region52: #{tpu_custom_call.1} parent=31 // pred_fallthru
          _
        // Predicated region
        $region53: #{tpu_custom_call.1} parent=31 // pred_check
          %p370 = pneg %p123
        $region54: #{tpu_custom_call.1} parent=31 // pred_check_branch
          %372 = sbr.rel (%p370) target = $region56
        $region55: #{tpu_custom_call.1} parent=31 // pred_region
          %s374 = ssub.s32 16, 16
          %375 = vsyncadd [#allocation5], %s374
          %s377 = sshll.u32 [#allocation9], 4
          %s378 = int_to_ptr.vmem [resolvable:$true] %s377
          %380 = dma.vmem_to_hbm [thread:$0]  %s378, 16, %s3, [#allocation5]
        $region56: #{tpu_custom_call.1} parent=31 // pred_fallthru
          _
        // Predicated region
        $region57: #{tpu_custom_call.1} parent=31 // pred_check
          %p381 = pneg %p123
        $region58: #{tpu_custom_call.1} parent=31 // pred_check_branch
          %383 = sbr.rel (%p381) target = $region60
        $region59: #{tpu_custom_call.1} parent=31 // pred_region
          %384 = dma.done [#allocation5], 16
        $region60: #{tpu_custom_call.1} parent=31 // pred_fallthru
          _
      $region32: #{tpu_custom_call.1} parent=5 // pred_fallthru
        _
      %p385 = scmp.le.s32.totalorder 2, %s16
      // Predicated region
      $region61: #{tpu_custom_call.1} parent=5 // pred_check
        %p386 = pneg %p385
      $region62: #{tpu_custom_call.1} parent=5 // pred_check_branch
        %388 = sbr.rel (%p386) target = $region64
      $region63: #{tpu_custom_call.1} parent=5 // pred_region
        %s389 = ssub.s32 %s16, 2
      $region64: #{tpu_custom_call.1} parent=5 // pred_fallthru
        _
    $region6: #{tpu_custom_call.1} parent=1 // loop_footer
      %s20 = sadd.s32 1, %s16
    $region7: #{tpu_custom_call.1} parent=1 // loop_footer_branch
      %15 = sbr.rel target = $region3
    $region8: #{tpu_custom_call.1} parent=1 // loop_exit
      _
    %390 = vsyncpa [#allocation4], 1
    %s391 = scalar_lea.sflag [#allocation4], 1
    %392 = vsyncpa %s391, 1
    %393 = vsyncpa [#allocation7], 1
    %s394 = scalar_lea.sflag [#allocation7], 1
    %395 = vsyncpa %s394, 1
    %396 = vsyncpa [#allocation5], 1
    %s397 = scalar_lea.sflag [#allocation5], 1
    %398 = vsyncpa %s397, 1

</llo_original>
